<compile_context>
chip_gen: v6e
topology: v6e:2x2x1
jax: 0.10.0
libtpu: 0.0.40
codegen_flags: <defaults>
</compile_context>

<pallas_src>
import jax
import jax.numpy as jnp
from jax.experimental import pallas as pl
from jax.experimental.pallas import tpu as pltpu


def _round_up(n: int, m: int) -> int:
    return (n + m - 1) // m * m


def rlcar_kernel(xT_ref, w1_ref, b1_ref, w2_ref, b2_ref, woT_ref, bo_ref, o_ref):
    # Transposed activations: (features, batch_tile); batch on the lane axis.
    xT = xT_ref[...]                                            # (d_in, TB) f32

    # fc1 + relu on the MXU: (64, d_in) @ (d_in, TB) -> (64, TB)
    h1 = jnp.dot(w1_ref[...], xT, preferred_element_type=jnp.float32)
    h1 = jnp.maximum(h1 + b1_ref[...], 0.0)

    # fc2 + relu on the MXU: (16, 64) @ (64, TB) -> (16, TB)
    h2 = jnp.dot(w2_ref[...], h1, preferred_element_type=jnp.float32)
    h2 = jnp.maximum(h2 + b2_ref[...], 0.0)

    # Output layer (16 -> 2) on the VPU/XLU: per-output-column broadcast
    # multiply + cross-sublane reduce.  Avoids pushing a K=16, M=2 matmul
    # through the MXU (MRF push/pop latency for ~1% utilization).
    woT = woT_ref[...]                                          # (16, 2)
    l0 = jnp.sum(woT[:, 0:1] * h2, axis=0, keepdims=True)       # (1, TB)
    l1 = jnp.sum(woT[:, 1:2] * h2, axis=0, keepdims=True)       # (1, TB)
    logits = jnp.concatenate([l0, l1], axis=0) + bo_ref[...]    # (2, TB)

    # sigmoid -> lane-dense (2, TB) store.
    o_ref[...] = jax.nn.sigmoid(logits)


def rlcar_forward(x, params, *, tile_b: int = 1024):
    """x: (B, input_size + 2).

    params (torch Linear layout, biases as columns):
      w1 (64, d_in), b1 (64, 1), w2 (16, 64), b2 (16, 1),
      woT (16, 2)  [= output.weight.T], bo (2, 1).
    Returns (B, 2) float32.
    """
    B, d_in = x.shape
    w1, b1 = params["w1"], params["b1"]
    w2, b2 = params["w2"], params["b2"]
    woT, bo = params["woT"], params["bo"]

    # Mirrors x.type(torch.float).
    x = x.astype(jnp.float32)

    # Batch tile: multiple of 128 (lane width), capped so per-tile VMEM stays
    # tiny on every generation (v5e/v6e/v7x); pad B up to a tile multiple.
    tile_b = _round_up(max(tile_b, 128), 128)
    TB = min(tile_b, _round_up(B, 128))
    B_pad = _round_up(B, TB)
    xT = jnp.pad(x, ((0, B_pad - B), (0, 0))).T                 # (d_in, B_pad)

    grid = (B_pad // TB,)

    # Weights/biases: full-array blocks, constant index_map -> VMEM-resident.
    resident = lambda a: pl.BlockSpec(a.shape, lambda i: (0, 0))

    weight_bytes = 4 * (64 * d_in + 64 + 16 * 64 + 16 + 16 * 2 + 2)
    cost = pl.CostEstimate(
        flops=2 * B_pad * (d_in * 64 + 64 * 16 + 16 * 2),
        transcendentals=2 * B_pad,                   # sigmoid on (2, B) outputs
        bytes_accessed=4 * d_in * B_pad + weight_bytes + 4 * 2 * B_pad,
    )

    outT = pl.pallas_call(
        rlcar_kernel,
        out_shape=jax.ShapeDtypeStruct((2, B_pad), jnp.float32),
        grid=grid,
        in_specs=[
            pl.BlockSpec((d_in, TB), lambda i: (0, i)),   # x tile (pipelined)
            resident(w1), resident(b1),
            resident(w2), resident(b2),
            resident(woT), resident(bo),
        ],
        out_specs=pl.BlockSpec((2, TB), lambda i: (0, i)),
        compiler_params=pltpu.CompilerParams(
            dimension_semantics=("parallel",),            # megacore on v7x
        ),
        cost_estimate=cost,
    )(xT, w1, b1, w2, b2, woT, bo)

    # Drop batch padding, back to (B, 2).
    return outT[:, :B].T


def init_params(key, input_size):
    """Deterministic synthetic parameters (torch-Linear (out,in) layout)."""
    d_in = input_size + 2
    ks = jax.random.split(key, 6)
    s = 0.1
    return {
        "w1": s * jax.random.normal(ks[0], (64, d_in), jnp.float32),
        "b1": s * jax.random.normal(ks[1], (64, 1), jnp.float32),
        "w2": s * jax.random.normal(ks[2], (16, 64), jnp.float32),
        "b2": s * jax.random.normal(ks[3], (16, 1), jnp.float32),
        "woT": s * jax.random.normal(ks[4], (16, 2), jnp.float32),   # output.weight.T
        "bo": s * jax.random.normal(ks[5], (2, 1), jnp.float32),
    }


if __name__ == "__main__":
    key = jax.random.PRNGKey(0)
    k_param, k_x = jax.random.split(key)

    input_size = 14          # fc1 input dim = input_size + 2 = 16
    batch = 8

    params = init_params(k_param, input_size)
    x = jax.random.normal(k_x, (batch, input_size + 2), jnp.float32)

    out = rlcar_forward(x, params)
    out = jax.block_until_ready(out)

    # Pure-JAX reference of the same math (untransposed).
    h1 = jnp.maximum(x @ params["w1"].T + params["b1"].T, 0.0)
    h2 = jnp.maximum(h1 @ params["w2"].T + params["b2"].T, 0.0)
    ref = jax.nn.sigmoid(h2 @ params["woT"] + params["bo"].T)
    assert out.shape == (batch, 2)
    assert jnp.allclose(out, ref, atol=1e-5), "mismatch vs reference"

    print("KERNEL_OK")
</pallas_src>

<mosaic_0001>
module attributes {stable_mosaic.version = 11 : i64} {
  func.func @rlcar_kernel(%arg0: i32, %arg1: memref<16x128xf32, #tpu.memory_space<vmem>>, %arg2: memref<64x16xf32, #tpu.memory_space<vmem>>, %arg3: memref<64x1xf32, #tpu.memory_space<vmem>>, %arg4: memref<16x64xf32, #tpu.memory_space<vmem>>, %arg5: memref<16x1xf32, #tpu.memory_space<vmem>>, %arg6: memref<16x2xf32, #tpu.memory_space<vmem>>, %arg7: memref<2x1xf32, #tpu.memory_space<vmem>>, %arg8: memref<2x128xf32, #tpu.memory_space<vmem>>) attributes {dimension_semantics = [#tpu.dimension_semantics<parallel>], iteration_bounds = array<i64: 1>, scalar_prefetch = 0 : i64, scratch_operands = 0 : i64, tpu.core_type = #tpu.core_type<tc>, window_params = [{transform_indices = @transform_0, window_bounds = array<i64: 16, 128>}, {pipeline_mode = #tpu.pipeline_mode<synchronous>, transform_indices = @transform_1, window_bounds = array<i64: 64, 16>}, {pipeline_mode = #tpu.pipeline_mode<synchronous>, transform_indices = @transform_2, window_bounds = array<i64: 64, 1>}, {pipeline_mode = #tpu.pipeline_mode<synchronous>, transform_indices = @transform_3, window_bounds = array<i64: 16, 64>}, {pipeline_mode = #tpu.pipeline_mode<synchronous>, transform_indices = @transform_4, window_bounds = array<i64: 16, 1>}, {pipeline_mode = #tpu.pipeline_mode<synchronous>, transform_indices = @transform_5, window_bounds = array<i64: 16, 2>}, {pipeline_mode = #tpu.pipeline_mode<synchronous>, transform_indices = @transform_6, window_bounds = array<i64: 2, 1>}, {transform_indices = @transform_7, window_bounds = array<i64: 2, 128>}]} {
    %c0 = arith.constant 0 : index
    %c0_0 = arith.constant 0 : index
    %0 = vector.load %arg1[%c0, %c0_0] : memref<16x128xf32, #tpu.memory_space<vmem>>, vector<16x128xf32>
    %c0_1 = arith.constant 0 : index
    %c0_2 = arith.constant 0 : index
    %1 = vector.load %arg2[%c0_1, %c0_2] : memref<64x16xf32, #tpu.memory_space<vmem>>, vector<64x16xf32>
    %cst = arith.constant dense<0.000000e+00> : vector<64x128xf32>
    %2 = tpu.matmul %1, %0, %cst {dimension_numbers = #tpu.dot_dimension_numbers<[1], [0], [0], [1], [0, 0, 1, 1], [], []>} : vector<64x16xf32>, vector<16x128xf32>, vector<64x128xf32> -> vector<64x128xf32>
    %c0_3 = arith.constant 0 : index
    %c0_4 = arith.constant 0 : index
    %3 = vector.load %arg3[%c0_3, %c0_4] : memref<64x1xf32, #tpu.memory_space<vmem>>, vector<64x1xf32>
    %4 = vector.broadcast %3 : vector<64x1xf32> to vector<64x128xf32>
    %5 = arith.addf %2, %4 : vector<64x128xf32>
    %cst_5 = arith.constant 0.000000e+00 : f32
    %6 = vector.broadcast %cst_5 : f32 to vector<64x128xf32>
    %7 = arith.maximumf %5, %6 : vector<64x128xf32>
    %c0_6 = arith.constant 0 : index
    %c0_7 = arith.constant 0 : index
    %8 = vector.load %arg4[%c0_6, %c0_7] : memref<16x64xf32, #tpu.memory_space<vmem>>, vector<16x64xf32>
    %cst_8 = arith.constant dense<0.000000e+00> : vector<16x128xf32>
    %9 = tpu.matmul %8, %7, %cst_8 {dimension_numbers = #tpu.dot_dimension_numbers<[1], [0], [0], [1], [0, 0, 1, 1], [], []>} : vector<16x64xf32>, vector<64x128xf32>, vector<16x128xf32> -> vector<16x128xf32>
    %c0_9 = arith.constant 0 : index
    %c0_10 = arith.constant 0 : index
    %10 = vector.load %arg5[%c0_9, %c0_10] : memref<16x1xf32, #tpu.memory_space<vmem>>, vector<16x1xf32>
    %11 = vector.broadcast %10 : vector<16x1xf32> to vector<16x128xf32>
    %12 = arith.addf %9, %11 : vector<16x128xf32>
    %cst_11 = arith.constant 0.000000e+00 : f32
    %13 = vector.broadcast %cst_11 : f32 to vector<16x128xf32>
    %14 = arith.maximumf %12, %13 : vector<16x128xf32>
    %c0_12 = arith.constant 0 : index
    %c0_13 = arith.constant 0 : index
    %15 = vector.load %arg6[%c0_12, %c0_13] : memref<16x2xf32, #tpu.memory_space<vmem>>, vector<16x2xf32>
    %16 = vector.extract_strided_slice %15 {offsets = [0, 0], sizes = [16, 1], strides = [1, 1]} : vector<16x2xf32> to vector<16x1xf32>
    %17 = vector.broadcast %16 : vector<16x1xf32> to vector<16x128xf32>
    %18 = arith.mulf %17, %14 : vector<16x128xf32>
    %cst_14 = arith.constant dense<0.000000e+00> : vector<128xf32>
    %19 = vector.multi_reduction <add>, %18, %cst_14 [0] : vector<16x128xf32> to vector<128xf32>
    %20 = vector.shape_cast %19 : vector<128xf32> to vector<1x128xf32>
    %21 = vector.extract_strided_slice %15 {offsets = [0, 1], sizes = [16, 1], strides = [1, 1]} : vector<16x2xf32> to vector<16x1xf32>
    %22 = vector.broadcast %21 : vector<16x1xf32> to vector<16x128xf32>
    %23 = arith.mulf %22, %14 : vector<16x128xf32>
    %cst_15 = arith.constant dense<0.000000e+00> : vector<128xf32>
    %24 = vector.multi_reduction <add>, %23, %cst_15 [0] : vector<16x128xf32> to vector<128xf32>
    %25 = vector.shape_cast %24 : vector<128xf32> to vector<1x128xf32>
    %26 = tpu.concatenate %20, %25 in 0 : vector<1x128xf32>, vector<1x128xf32> -> vector<2x128xf32>
    %c0_16 = arith.constant 0 : index
    %c0_17 = arith.constant 0 : index
    %27 = vector.load %arg7[%c0_16, %c0_17] : memref<2x1xf32, #tpu.memory_space<vmem>>, vector<2x1xf32>
    %28 = vector.broadcast %27 : vector<2x1xf32> to vector<2x128xf32>
    %29 = arith.addf %26, %28 : vector<2x128xf32>
    %30 = arith.negf %29 : vector<2x128xf32>
    %31 = math.exp %30 : vector<2x128xf32>
    %cst_18 = arith.constant 1.000000e+00 : f32
    %32 = vector.broadcast %cst_18 : f32 to vector<2x128xf32>
    %33 = arith.addf %32, %31 : vector<2x128xf32>
    %34 = arith.divf %32, %33 : vector<2x128xf32>
    %c0_19 = arith.constant 0 : index
    %c0_20 = arith.constant 0 : index
    %35 = vector.load %arg8[%c0_19, %c0_20] : memref<2x128xf32, #tpu.memory_space<vmem>>, vector<2x128xf32>
    tpu.vector_store %arg8[%c0_19, %c0_20], %34 {strides = array<i32>} : memref<2x128xf32, #tpu.memory_space<vmem>>, vector<2x128xf32>,
    return
  }
  func.func @transform_0(%arg0: i32) -> (i32, i32) {
    %c0_i32 = arith.constant 0 : i32
    %c0_i32_0 = arith.constant 0 : i32
    return %c0_i32, %arg0 : i32, i32
  }
  func.func @transform_1(%arg0: i32) -> (i32, i32) {
    %c0_i32 = arith.constant 0 : i32
    %c0_i32_0 = arith.constant 0 : i32
    %c0_i32_1 = arith.constant 0 : i32
    return %c0_i32, %c0_i32_0 : i32, i32
  }
  func.func @transform_2(%arg0: i32) -> (i32, i32) {
    %c0_i32 = arith.constant 0 : i32
    %c0_i32_0 = arith.constant 0 : i32
    %c0_i32_1 = arith.constant 0 : i32
    return %c0_i32, %c0_i32_0 : i32, i32
  }
  func.func @transform_3(%arg0: i32) -> (i32, i32) {
    %c0_i32 = arith.constant 0 : i32
    %c0_i32_0 = arith.constant 0 : i32
    %c0_i32_1 = arith.constant 0 : i32
    return %c0_i32, %c0_i32_0 : i32, i32
  }
  func.func @transform_4(%arg0: i32) -> (i32, i32) {
    %c0_i32 = arith.constant 0 : i32
    %c0_i32_0 = arith.constant 0 : i32
    %c0_i32_1 = arith.constant 0 : i32
    return %c0_i32, %c0_i32_0 : i32, i32
  }
  func.func @transform_5(%arg0: i32) -> (i32, i32) {
    %c0_i32 = arith.constant 0 : i32
    %c0_i32_0 = arith.constant 0 : i32
    %c0_i32_1 = arith.constant 0 : i32
    return %c0_i32, %c0_i32_0 : i32, i32
  }
  func.func @transform_6(%arg0: i32) -> (i32, i32) {
    %c0_i32 = arith.constant 0 : i32
    %c0_i32_0 = arith.constant 0 : i32
    %c0_i32_1 = arith.constant 0 : i32
    return %c0_i32, %c0_i32_0 : i32, i32
  }
  func.func @transform_7(%arg0: i32) -> (i32, i32) {
    %c0_i32 = arith.constant 0 : i32
    %c0_i32_0 = arith.constant 0 : i32
    return %c0_i32, %arg0 : i32, i32
  }
}

</mosaic_0001>

<llo_original>
// kernel: tpu_custom_call.1
$region0: #{tpu_custom_call.1}
  #allocation0 [shape = 'u32[]', space=smem, size = 0x4, offset = 0x4, fixed_abs, tag = 'smem constant byte address 0x4 - core index']
  #allocation1 [shape = 'u32[144,128]{1,0:T(1,128)}', space=vmem, size = 0x12000, scoped, tag = 'internal scratch']
  %s0 = inlined_call_operand.vmem [shape: f32[16,128], index: 0, kind: input, shape index: {}]
  %s1 = inlined_call_operand.vmem [shape: f32[64,16], index: 1, kind: input, shape index: {}]
  %s2 = inlined_call_operand.vmem [shape: f32[64,1], index: 2, kind: input, shape index: {}]
  %s3 = inlined_call_operand.vmem [shape: f32[16,64], index: 3, kind: input, shape index: {}]
  %s4 = inlined_call_operand.vmem [shape: f32[16,1], index: 4, kind: input, shape index: {}]
  %s5 = inlined_call_operand.vmem [shape: f32[16,2], index: 5, kind: input, shape index: {}]
  %s6 = inlined_call_operand.vmem [shape: f32[2,1], index: 6, kind: input, shape index: {}]
  %s7 = inlined_call_operand.hbm [shape: f32[2,128], index: 7, kind: output, shape index: {}]
  %s8 = sld [smem:[#allocation0]]
  $region38: #{tpu_custom_call.1} parent=0
    _
  %s10 = ssub.s32 1, %s8
  %s11 = scalar_select 0, %s10, %s8
  $region1: #{tpu_custom_call.1} parent=0
    #allocation2 [shape = 'u8[1024]{0}', space=vmem, size = 0x400, scoped, tag = 'output window, operand 0, single buffered']
    #allocation3 [shape = 's32[1]{0}', space=sflag, size = 0x4, scoped, tag = 'scoped memory for tpu_custom_call.1']
    %12 = vsyncpa [#allocation3], 0
    // Predicated region
    $region2: #{tpu_custom_call.1} parent=1 // pred_check
      _
    $region3: #{tpu_custom_call.1} parent=1 // pred_check_branch
      %14 = sbr.rel (0) target = $region5
    $region4: #{tpu_custom_call.1} parent=1 // pred_region
      _
    $region5: #{tpu_custom_call.1} parent=1 // pred_fallthru
      _
    // Predicated region
    $region6: #{tpu_custom_call.1} parent=1 // pred_check
      _
    $region7: #{tpu_custom_call.1} parent=1 // pred_check_branch
      %16 = sbr.rel (0) target = $region9
    $region8: #{tpu_custom_call.1} parent=1 // pred_region
      _
    $region9: #{tpu_custom_call.1} parent=1 // pred_fallthru
      _
    // Predicated region
    $region10: #{tpu_custom_call.1} parent=1 // pred_check
      _
    $region11: #{tpu_custom_call.1} parent=1 // pred_check_branch
      %18 = sbr.rel (0) target = $region13
    $region12: #{tpu_custom_call.1} parent=1 // pred_region
      _
    $region13: #{tpu_custom_call.1} parent=1 // pred_fallthru
      _
    // Predicated region
    $region14: #{tpu_custom_call.1} parent=1 // pred_check
      _
    $region15: #{tpu_custom_call.1} parent=1 // pred_check_branch
      %20 = sbr.rel (0) target = $region17
    $region16: #{tpu_custom_call.1} parent=1 // pred_region
      _
    $region17: #{tpu_custom_call.1} parent=1 // pred_fallthru
      _
    // Predicated region
    $region18: #{tpu_custom_call.1} parent=1 // pred_check
      _
    $region19: #{tpu_custom_call.1} parent=1 // pred_check_branch
      %22 = sbr.rel (0) target = $region21
    $region20: #{tpu_custom_call.1} parent=1 // pred_region
      _
    $region21: #{tpu_custom_call.1} parent=1 // pred_fallthru
      _
    // Predicated region
    $region22: #{tpu_custom_call.1} parent=1 // pred_check
      _
    $region23: #{tpu_custom_call.1} parent=1 // pred_check_branch
      %24 = sbr.rel (0) target = $region25
    $region24: #{tpu_custom_call.1} parent=1 // pred_region
      _
    $region25: #{tpu_custom_call.1} parent=1 // pred_fallthru
      _
    // Predicated region
    $region26: #{tpu_custom_call.1} parent=1 // pred_check
      _
    $region27: #{tpu_custom_call.1} parent=1 // pred_check_branch
      %26 = sbr.rel (0) target = $region29
    $region28: #{tpu_custom_call.1} parent=1 // pred_region
      _
    $region29: #{tpu_custom_call.1} parent=1 // pred_fallthru
      _
    %v27 = vld [vmem:[%s0] sm:$0xff]
    %v28 = vld [vmem:[%s0 + $0x8] sm:$0xff]
    %v29 = vld [vmem:[%s1] sm:$0xff]
    %v30 = vld [vmem:[%s1 + $0x8] sm:$0xff]
    %v31 = vld [vmem:[%s1 + $0x10] sm:$0xff]
    %v32 = vld [vmem:[%s1 + $0x18] sm:$0xff]
    %v33 = vld [vmem:[%s1 + $0x20] sm:$0xff]
    %v34 = vld [vmem:[%s1 + $0x28] sm:$0xff]
    %v35 = vld [vmem:[%s1 + $0x30] sm:$0xff]
    %v36 = vld [vmem:[%s1 + $0x38] sm:$0xff]
    %v37 = vld [vmem:[%s2] sm:$0xff]
    %v38 = vld [vmem:[%s2 + $0x8] sm:$0xff]
    %v39 = vld [vmem:[%s2 + $0x10] sm:$0xff]
    %v40 = vld [vmem:[%s2 + $0x18] sm:$0xff]
    %v41 = vld [vmem:[%s2 + $0x20] sm:$0xff]
    %v42 = vld [vmem:[%s2 + $0x28] sm:$0xff]
    %v43 = vld [vmem:[%s2 + $0x30] sm:$0xff]
    %v44 = vld [vmem:[%s2 + $0x38] sm:$0xff]
    %46 = vset.pattern.permute.xlu0 0
    %47 = vperm.xlu0 %46, %v37
    %v48 = vpop.permute.xlu0 %47
    %51 = vset.pattern.permute.xlu0 0
    %52 = vperm.xlu0 %51, %v38
    %v53 = vpop.permute.xlu0 %52
    %56 = vset.pattern.permute.xlu0 0
    %57 = vperm.xlu0 %56, %v39
    %v58 = vpop.permute.xlu0 %57
    %61 = vset.pattern.permute.xlu0 0
    %62 = vperm.xlu0 %61, %v40
    %v63 = vpop.permute.xlu0 %62
    %66 = vset.pattern.permute.xlu0 0
    %67 = vperm.xlu0 %66, %v41
    %v68 = vpop.permute.xlu0 %67
    %71 = vset.pattern.permute.xlu0 0
    %72 = vperm.xlu0 %71, %v42
    %v73 = vpop.permute.xlu0 %72
    %76 = vset.pattern.permute.xlu0 0
    %77 = vperm.xlu0 %76, %v43
    %v78 = vpop.permute.xlu0 %77
    %81 = vset.pattern.permute.xlu0 0
    %82 = vperm.xlu0 %81, %v44
    %v83 = vpop.permute.xlu0 %82
    %vm85 = vcmask 130048
    %v87 = vsel %vm85, %v29, 0
    %v90 = vsel %vm85, %v30, 0
    %v93 = vsel %vm85, %v31, 0
    %v96 = vsel %vm85, %v32, 0
    %v99 = vsel %vm85, %v33, 0
    %v102 = vsel %vm85, %v34, 0
    %v105 = vsel %vm85, %v35, 0
    %v108 = vsel %vm85, %v36, 0
    %110 = vmatprep.subr.mxu0 0.0
    %111 = vmatpush1.msra.mxu0 0.0
    %112 = vmatprep.subr.mxu0 0.0
    %113 = vmatpush1.msra.mxu0 0.0
    %114 = vmatprep.subr.mxu0 0.0
    %115 = vmatpush1.msra.mxu0 0.0
    %116 = vmatprep.subr.mxu0 0.0
    %117 = vmatpush1.msra.mxu0 0.0
    %118 = vmatprep.subr.mxu0 0.0
    %119 = vmatpush1.msra.mxu0 0.0
    %120 = vmatprep.subr.mxu0 0.0
    %121 = vmatpush1.msra.mxu0 0.0
    %122 = vmatprep.subr.mxu0 0.0
    %123 = vmatpush1.msra.mxu0 0.0
    %124 = vmatprep.subr.mxu0 0.0
    %125 = vmatpush1.msra.mxu0 0.0
    %126 = vmatprep.subr.mxu0 0.0
    %127 = vmatpush1.msra.mxu0 0.0
    %128 = vmatprep.subr.mxu0 0.0
    %129 = vmatpush1.msra.mxu0 0.0
    %130 = vmatprep.subr.mxu0 0.0
    %131 = vmatpush1.msra.mxu0 0.0
    %132 = vmatprep.subr.mxu0 0.0
    %133 = vmatpush1.msra.mxu0 0.0
    %134 = vmatprep.subr.mxu0 0.0
    %135 = vmatpush1.msra.mxu0 0.0
    %136 = vmatprep.subr.mxu0 0.0
    %137 = vmatpush1.msra.mxu0 0.0
    %138 = vmatprep.subr.mxu0 0.0
    %139 = vmatpush1.msra.mxu0 %v28
    %140 = vmatprep.subr.mxu0 0.0
    %141 = vmatpush1.msra.mxu0 %v27
    %142 = vmatprep.subr.mxu0 0.0
    %143 = vmatpush2.msra.mxu0 0.0
    %144 = vmatprep.subr.mxu0 0.0
    %145 = vmatpush2.msra.mxu0 0.0
    %146 = vmatprep.subr.mxu0 0.0
    %147 = vmatpush2.msra.mxu0 0.0
    %148 = vmatprep.subr.mxu0 0.0
    %149 = vmatpush2.msra.mxu0 0.0
    %150 = vmatprep.subr.mxu0 0.0
    %151 = vmatpush2.msra.mxu0 0.0
    %152 = vmatprep.subr.mxu0 0.0
    %153 = vmatpush2.msra.mxu0 0.0
    %154 = vmatprep.subr.mxu0 0.0
    %155 = vmatpush2.msra.mxu0 0.0
    %156 = vmatprep.subr.mxu0 0.0
    %157 = vmatpush2.msra.mxu0 0.0
    %158 = vmatprep.subr.mxu0 0.0
    %159 = vmatpush2.msra.mxu0 0.0
    %160 = vmatprep.subr.mxu0 0.0
    %161 = vmatpush2.msra.mxu0 0.0
    %162 = vmatprep.subr.mxu0 0.0
    %163 = vmatpush2.msra.mxu0 0.0
    %164 = vmatprep.subr.mxu0 0.0
    %165 = vmatpush2.msra.mxu0 0.0
    %166 = vmatprep.subr.mxu0 0.0
    %167 = vmatpush2.msra.mxu0 0.0
    %168 = vmatprep.subr.mxu0 0.0
    %169 = vmatpush2.msra.mxu0 0.0
    %170 = vmatprep.subr.mxu0 0.0
    %171 = vmatpush2.msra.mxu0 0.0
    %172 = vmatprep.subr.mxu0 0.0
    %173 = vmatpush2.msra.mxu0 0.0
    %174 = vmatprep.mubr.f32.mxu0 0.0
    %175 = vmatmul.mubr.f32.gmra.mxu0 %v87
    %v176 = vpop.f32.mrf.mxu0
    %v177 = vadd.f32 %v48, %v176
    %v178 = vpop.f32.mrf.mxu0
    %179 = vmatprep.mubr.f32.mxu0 0.0
    %180 = vmatmul.mubr.f32.gmra.mxu0 %v90
    %v181 = vpop.f32.mrf.mxu0
    %v182 = vadd.f32 %v53, %v181
    %v183 = vpop.f32.mrf.mxu0
    %184 = vmatprep.mubr.f32.mxu0 0.0
    %185 = vmatmul.mubr.f32.gmra.mxu0 %v93
    %v186 = vpop.f32.mrf.mxu0
    %v187 = vadd.f32 %v58, %v186
    %v188 = vpop.f32.mrf.mxu0
    %189 = vmatprep.mubr.f32.mxu0 0.0
    %190 = vmatmul.mubr.f32.gmra.mxu0 %v96
    %v191 = vpop.f32.mrf.mxu0
    %v192 = vadd.f32 %v63, %v191
    %v193 = vpop.f32.mrf.mxu0
    %194 = vmatprep.mubr.f32.mxu0 0.0
    %195 = vmatmul.mubr.f32.gmra.mxu0 %v99
    %v196 = vpop.f32.mrf.mxu0
    %v197 = vadd.f32 %v68, %v196
    %v198 = vpop.f32.mrf.mxu0
    %199 = vmatprep.mubr.f32.mxu0 0.0
    %200 = vmatmul.mubr.f32.gmra.mxu0 %v102
    %v201 = vpop.f32.mrf.mxu0
    %v202 = vadd.f32 %v73, %v201
    %v203 = vpop.f32.mrf.mxu0
    %204 = vmatprep.mubr.f32.mxu0 0.0
    %205 = vmatmul.mubr.f32.gmra.mxu0 %v105
    %v206 = vpop.f32.mrf.mxu0
    %v207 = vadd.f32 %v78, %v206
    %v208 = vpop.f32.mrf.mxu0
    %209 = vmatprep.mubr.f32.mxu0 0.0
    %210 = vmatmul.mubr.f32.gmra.mxu0 %v108
    %v211 = vpop.f32.mrf.mxu0
    %v212 = vadd.f32 %v83, %v211
    %v213 = vpop.f32.mrf.mxu0
    %214 = vdwg.mxu0
    %v215 = vmax.f32 %v177, 0.0
    %v216 = vmax.f32 %v182, 0.0
    %v217 = vmax.f32 %v187, 0.0
    %v218 = vmax.f32 %v192, 0.0
    %v219 = vmax.f32 %v197, 0.0
    %v220 = vmax.f32 %v202, 0.0
    %v221 = vmax.f32 %v207, 0.0
    %v222 = vmax.f32 %v212, 0.0
    %v223 = vld [vmem:[%s3] sm:$0xff]
    %v224 = vld [vmem:[%s3 + $0x8] sm:$0xff]
    %v225 = vld [vmem:[%s4] sm:$0xff]
    %v226 = vld [vmem:[%s4 + $0x8] sm:$0xff]
    %228 = vset.pattern.permute.xlu0 0
    %229 = vperm.xlu0 %228, %v225
    %v230 = vpop.permute.xlu0 %229
    %233 = vset.pattern.permute.xlu0 0
    %234 = vperm.xlu0 %233, %v226
    %v235 = vpop.permute.xlu0 %234
    %vm237 = vcmask 523264
    %v239 = vsel %vm237, %v223, 0
    %v242 = vsel %vm237, %v224, 0
    %244 = vmatprep.subr.mxu0 0.0
    %245 = vmatpush1.msra.mxu0 0.0
    %246 = vmatprep.subr.mxu0 0.0
    %247 = vmatpush1.msra.mxu0 0.0
    %248 = vmatprep.subr.mxu0 0.0
    %249 = vmatpush1.msra.mxu0 0.0
    %250 = vmatprep.subr.mxu0 0.0
    %251 = vmatpush1.msra.mxu0 0.0
    %252 = vmatprep.subr.mxu0 0.0
    %253 = vmatpush1.msra.mxu0 0.0
    %254 = vmatprep.subr.mxu0 0.0
    %255 = vmatpush1.msra.mxu0 0.0
    %256 = vmatprep.subr.mxu0 0.0
    %257 = vmatpush1.msra.mxu0 0.0
    %258 = vmatprep.subr.mxu0 0.0
    %259 = vmatpush1.msra.mxu0 0.0
    %260 = vmatprep.subr.mxu0 0.0
    %261 = vmatpush1.msra.mxu0 %v222
    %262 = vmatprep.subr.mxu0 0.0
    %263 = vmatpush1.msra.mxu0 %v221
    %264 = vmatprep.subr.mxu0 0.0
    %265 = vmatpush1.msra.mxu0 %v220
    %266 = vmatprep.subr.mxu0 0.0
    %267 = vmatpush1.msra.mxu0 %v219
    %268 = vmatprep.subr.mxu0 0.0
    %269 = vmatpush1.msra.mxu0 %v218
    %270 = vmatprep.subr.mxu0 0.0
    %271 = vmatpush1.msra.mxu0 %v217
    %272 = vmatprep.subr.mxu0 0.0
    %273 = vmatpush1.msra.mxu0 %v216
    %274 = vmatprep.subr.mxu0 0.0
    %275 = vmatpush1.msra.mxu0 %v215
    %276 = vmatprep.subr.mxu0 0.0
    %277 = vmatpush2.msra.mxu0 0.0
    %278 = vmatprep.subr.mxu0 0.0
    %279 = vmatpush2.msra.mxu0 0.0
    %280 = vmatprep.subr.mxu0 0.0
    %281 = vmatpush2.msra.mxu0 0.0
    %282 = vmatprep.subr.mxu0 0.0
    %283 = vmatpush2.msra.mxu0 0.0
    %284 = vmatprep.subr.mxu0 0.0
    %285 = vmatpush2.msra.mxu0 0.0
    %286 = vmatprep.subr.mxu0 0.0
    %287 = vmatpush2.msra.mxu0 0.0
    %288 = vmatprep.subr.mxu0 0.0
    %289 = vmatpush2.msra.mxu0 0.0
    %290 = vmatprep.subr.mxu0 0.0
    %291 = vmatpush2.msra.mxu0 0.0
    %292 = vmatprep.subr.mxu0 0.0
    %293 = vmatpush2.msra.mxu0 0.0
    %294 = vmatprep.subr.mxu0 0.0
    %295 = vmatpush2.msra.mxu0 0.0
    %296 = vmatprep.subr.mxu0 0.0
    %297 = vmatpush2.msra.mxu0 0.0
    %298 = vmatprep.subr.mxu0 0.0
    %299 = vmatpush2.msra.mxu0 0.0
    %300 = vmatprep.subr.mxu0 0.0
    %301 = vmatpush2.msra.mxu0 0.0
    %302 = vmatprep.subr.mxu0 0.0
    %303 = vmatpush2.msra.mxu0 0.0
    %304 = vmatprep.subr.mxu0 0.0
    %305 = vmatpush2.msra.mxu0 0.0
    %306 = vmatprep.subr.mxu0 0.0
    %307 = vmatpush2.msra.mxu0 0.0
    %308 = vmatprep.mubr.f32.mxu0 0.0
    %309 = vmatmul.mubr.f32.gmra.mxu0 %v239
    %v310 = vpop.f32.mrf.mxu0
    %v311 = vadd.f32 %v230, %v310
    %v312 = vpop.f32.mrf.mxu0
    %313 = vmatprep.mubr.f32.mxu0 0.0
    %314 = vmatmul.mubr.f32.gmra.mxu0 %v242
    %v315 = vpop.f32.mrf.mxu0
    %v316 = vadd.f32 %v235, %v315
    %v317 = vpop.f32.mrf.mxu0
    %318 = vdwg.mxu0
    %v319 = vmax.f32 %v311, 0.0
    %v320 = vmax.f32 %v316, 0.0
    %v321 = vld [vmem:[%s5] sm:$0xff]
    %v322 = vld [vmem:[%s5 + $0x8] sm:$0xff]
    %324 = vset.pattern.permute.xlu0 0
    %325 = vperm.xlu0 %324, %v321
    %v326 = vpop.permute.xlu0 %325
    %329 = vset.pattern.permute.xlu0 0
    %330 = vperm.xlu0 %329, %v322
    %v331 = vpop.permute.xlu0 %330
    %v333 = vmul.f32 %v326, %v319
    %v334 = vmul.f32 %v331, %v320
    %v335 = vadd.f32 %v333, %v334
    %v336 = vrot.slane %v335, 4
    %v337 = vadd.f32 %v335, %v336
    %v338 = vrot.slane %v337, 2
    %v339 = vadd.f32 %v337, %v338
    %v340 = vrot.slane %v339, 1
    %v341 = vadd.f32 %v339, %v340
    %342 = vset.pattern.permute.xlu0 1
    %343 = vperm.xlu0 %342, %v321
    %v344 = vpop.permute.xlu0 %343
    %346 = vset.pattern.permute.xlu0 1
    %347 = vperm.xlu0 %346, %v322
    %v348 = vpop.permute.xlu0 %347
    %v350 = vmul.f32 %v344, %v319
    %v351 = vmul.f32 %v348, %v320
    %v352 = vadd.f32 %v350, %v351
    %v353 = vrot.slane %v352, 4
    %v354 = vadd.f32 %v352, %v353
    %v355 = vrot.slane %v354, 2
    %v356 = vadd.f32 %v354, %v355
    %v357 = vrot.slane %v356, 1
    %v358 = vadd.f32 %v356, %v357
    %vm359 = vcmask 1040384
    %v360 = vsel %vm359, %v341, %v358
    %v361 = vld [vmem:[%s6] sm:$0x3]
    %363 = vset.pattern.permute.xlu0 0
    %364 = vperm.xlu0 %363, %v361
    %v365 = vpop.permute.xlu0 %364
    %v367 = vadd.f32 %v360, %v365
    %v368 = vxor.u32 %v367, 2147483648
    %v369 = vmul.f32 %v368, 1.442695
    %v370 = vpow.pop %v369
    %v371 = vadd.f32 %v370, 1.0
    %v372 = vrcp.pop %v371
    %v373 = vmul.f32 1.0, %v372
    %374 = vst [vmem:[#allocation2] sm:$0x3] %v373
    // Predicated region
    $region30: #{tpu_custom_call.1} parent=1 // pred_check
      _
    $region31: #{tpu_custom_call.1} parent=1 // pred_check_branch
      %376 = sbr.rel (0) target = $region33
    $region32: #{tpu_custom_call.1} parent=1 // pred_region
      %s378 = ssub.s32 32, 32
      %379 = vsyncadd [#allocation3], %s378
      %s381 = sshll.u32 [#allocation2], 4
      %s382 = int_to_ptr.vmem [resolvable:$true] %s381
      %384 = dma.vmem_to_hbm [thread:$0]  %s382, 32, %s7, [#allocation3]
    $region33: #{tpu_custom_call.1} parent=1 // pred_fallthru
      _
    // Predicated region
    $region34: #{tpu_custom_call.1} parent=1 // pred_check
      _
    $region35: #{tpu_custom_call.1} parent=1 // pred_check_branch
      %386 = sbr.rel (0) target = $region37
    $region36: #{tpu_custom_call.1} parent=1 // pred_region
      %387 = dma.done [#allocation3], 32
    $region37: #{tpu_custom_call.1} parent=1 // pred_fallthru
      _
    %388 = vsyncpa [#allocation3], 1

</llo_original>
